<compile_context>
chip_gen: v6e
topology: v6e:2x2x1
jax: 0.10.0
libtpu: 0.0.40
codegen_flags: <defaults>
</compile_context>

<pallas_src>
import jax
import jax.numpy as jnp
from jax import lax
from jax.experimental import pallas as pl
from jax.experimental.pallas import tpu as pltpu


_MIB = 1024 * 1024


def _vmem_capacity_bytes():
    """Physical VMEM of the local TPU (fallback: 128 MiB for v5e/v6e-class parts)."""
    try:
        return int(pltpu.get_tpu_info().vmem_capacity_bytes)
    except Exception:
        return 128 * _MIB


def _choose_block_rows(n, c, itemsize, vmem_budget_bytes, max_rows=8192):
    """Largest row tile whose double-buffered inputs + live f32 intermediates fit."""
    align = 16 if itemsize == 2 else 8
    # 2 logit inputs x 2 pipeline buffers (input dtype) + ~5 live (TM, C) f32
    # intermediates (st_shift, log_p_student, tt_shift, tt_exp, fused product).
    per_row = (2 * 2 * itemsize + 5 * 4) * c + 8
    tm = vmem_budget_bytes // max(per_row, 1)
    tm = min(tm, max_rows)
    if tm >= n:
        return n                                  # single full-extent block (always legal)
    tm = max(align, (tm // align) * align)
    return min(tm, n)


def _make_kernel(temperature, n_rows, block_rows, num_classes):
    temp = float(temperature)
    inv_t = 1.0 / temp
    t_is_one = temp == 1.0

    def kernel(s_ref, t_ref, tgt_ref, out_ref):
        i = pl.program_id(0)

        # ---- student log-softmax at temperature T ----
        s = s_ref[...].astype(jnp.float32)                    # (TM, C)
        st = s if t_is_one else s * inv_t                     # raw s dies here
        st_max = jnp.max(st, axis=1, keepdims=True)
        st_shift = st - st_max
        st_sum = jnp.sum(jnp.exp(st_shift), axis=1, keepdims=True)
        log_st_sum = jnp.log(st_sum)
        log_p_student = st_shift - log_st_sum

        # ---- KL(teacher || student) without materializing p_teacher / log_p_teacher ----
        t = t_ref[...].astype(jnp.float32)                    # (TM, C)
        tt = t if t_is_one else t * inv_t                     # raw t dies here
        tt_max = jnp.max(tt, axis=1, keepdims=True)
        tt_shift = tt - tt_max
        tt_exp = jnp.exp(tt_shift)
        tt_sum = jnp.sum(tt_exp, axis=1, keepdims=True)       # (TM, 1)
        kl_inner = jnp.sum(tt_exp * (tt_shift - log_p_student),
                           axis=1, keepdims=True)             # (TM, 1)
        kl_row = kl_inner * pl.reciprocal(tt_sum, approx=False) - jnp.log(tt_sum)

        # ---- hard CE on un-scaled student logits, reusing the scaled pass ----
        tgt = tgt_ref[...]                                     # (TM, 1) int32
        cls_ids = lax.broadcasted_iota(jnp.int32, (block_rows, num_classes), 1)
        onehot = cls_ids == tgt
        st_shift_tgt = jnp.sum(jnp.where(onehot, st_shift, 0.0),
                               axis=1, keepdims=True)          # (TM, 1)
        if t_is_one:
            ce_row = log_st_sum - st_shift_tgt
        else:
            # logsumexp(s) - s[target] with s = T*st; the T*st_max terms cancel.
            hard_sum = jnp.sum(jnp.exp(temp * st_shift), axis=1, keepdims=True)
            ce_row = jnp.log(hard_sum) - temp * st_shift_tgt

        # ---- mask rows of the (possibly partial) last block, reduce to a scalar ----
        row_ids = i * block_rows + lax.broadcasted_iota(
            jnp.int32, (block_rows, 1), 0)
        valid = row_ids < n_rows
        partial = jnp.sum(jnp.where(valid, kl_row + ce_row, 0.0))

        # Per-block partial written into its own (1, 8, 128) tile (lane-dense,
        # unmasked store); the wrapper sums everything.  No shared accumulator,
        # so the row axis can be "parallel" (v7x megacore).
        r = lax.broadcasted_iota(jnp.int32, (1, 8, 128), 1)
        c_ = lax.broadcasted_iota(jnp.int32, (1, 8, 128), 2)
        out_ref[...] = jnp.where((r == 0) & (c_ == 0), partial, 0.0)

    return kernel


def adaptive_confidence_distillation_loss(student_logits,
                                          teacher_logits,
                                          targets,
                                          temperature: float = 1.0,
                                          block_rows: int | None = None):
    """student_logits, teacher_logits: (N, C) float (f32 or bf16); targets: (N,) int labels."""
    n, c = student_logits.shape
    itemsize = jnp.dtype(student_logits.dtype).itemsize

    vmem_cap = _vmem_capacity_bytes()
    vmem_budget = int(vmem_cap * 0.40)     # tile-sizing budget (~25 MiB v7x, ~51 MiB v5e/v6e)
    vmem_limit = int(vmem_cap * 0.60)      # scoped limit, leaves Mosaic scratch headroom

    if block_rows is None:
        tm = _choose_block_rows(n, c, itemsize, vmem_budget)
    else:
        align = 16 if itemsize == 2 else 8
        tm = min(int(block_rows), n)
        if tm < n:
            tm = max(align, (tm // align) * align)

    num_blocks = pl.cdiv(n, tm)
    targets_2d = targets.astype(jnp.int32).reshape(n, 1)
    kernel = _make_kernel(temperature, n, tm, c)

    partials = pl.pallas_call(
        kernel,
        grid=(num_blocks,),
        in_specs=[
            pl.BlockSpec((tm, c), lambda i: (i, 0)),     # student logits block
            pl.BlockSpec((tm, c), lambda i: (i, 0)),     # teacher logits block
            pl.BlockSpec((tm, 1), lambda i: (i, 0)),     # integer targets column
        ],
        out_specs=pl.BlockSpec((1, 8, 128), lambda i: (i, 0, 0)),
        out_shape=jax.ShapeDtypeStruct((num_blocks, 8, 128), jnp.float32),
        compiler_params=pltpu.CompilerParams(
            dimension_semantics=("parallel",),           # independent per-block partials
            vmem_limit_bytes=vmem_limit,
        ),
    )(student_logits, teacher_logits, targets_2d)

    return jnp.sum(partials) / n


def _reference(student_logits, teacher_logits, targets, temperature=1.0):
    s = student_logits.astype(jnp.float32)
    t = teacher_logits.astype(jnp.float32)
    n, _ = s.shape
    p_teacher = jax.nn.softmax(t / temperature, axis=1)
    log_p_student = jax.nn.log_softmax(s / temperature, axis=1)
    kl = jnp.sum(p_teacher * (jnp.log(p_teacher) - log_p_student)) / n
    log_p = jax.nn.log_softmax(s, axis=1)
    ce = -jnp.mean(jnp.take_along_axis(log_p, targets[:, None], axis=1))
    return kl + ce


def _run_case(key, n, c, temperature, block_rows=None, dtype=jnp.float32):
    k1, k2, k3 = jax.random.split(key, 3)
    student = jax.random.normal(k1, (n, c), dtype=jnp.float32).astype(dtype)
    teacher = jax.random.normal(k2, (n, c), dtype=jnp.float32).astype(dtype)
    targets = jax.random.randint(k3, (n,), 0, c, dtype=jnp.int32)

    loss = adaptive_confidence_distillation_loss(
        student, teacher, targets, temperature, block_rows=block_rows)
    loss = jax.block_until_ready(loss)
    ref = _reference(student, teacher, targets, temperature)
    assert jnp.allclose(loss, ref, rtol=1e-5, atol=1e-4), (n, c, temperature, loss, ref)


if __name__ == "__main__":
    root = jax.random.PRNGKey(0)
    k_a, k_b, k_c, k_d = jax.random.split(root, 4)

    # 1) batch=8, classes=128, T=1 (specialized CE path, single full block)
    _run_case(k_a, n=8, c=128, temperature=1.0)
    # 2) batch=20, classes=128, T=2, forced 8-row tiles (multi-block parallel grid + tail mask)
    _run_case(k_b, n=20, c=128, temperature=2.0, block_rows=8)
    # 3) batch=16, classes=256, T=4 (auto tile selection, non-unit temperature)
    _run_case(k_c, n=16, c=256, temperature=4.0)
    # 4) batch=24, classes=128, T=2, bf16 logits, 16-row tiles (bf16 alignment + tail mask)
    _run_case(k_d, n=24, c=128, temperature=2.0, block_rows=16, dtype=jnp.bfloat16)

    print("KERNEL_OK")
</pallas_src>

<mosaic_0001>
module attributes {stable_mosaic.version = 11 : i64} {
  func.func @kernel(%arg0: i32, %arg1: memref<8x128xf32, #tpu.memory_space<vmem>>, %arg2: memref<8x128xf32, #tpu.memory_space<vmem>>, %arg3: memref<8x1xi32, #tpu.memory_space<vmem>>, %arg4: memref<1x8x128xf32, #tpu.memory_space<vmem>>) attributes {dimension_semantics = [#tpu.dimension_semantics<parallel>], iteration_bounds = array<i64: 1>, scalar_prefetch = 0 : i64, scratch_operands = 0 : i64, tpu.core_type = #tpu.core_type<tc>, window_params = [{transform_indices = @transform_0, window_bounds = array<i64: 8, 128>}, {transform_indices = @transform_1, window_bounds = array<i64: 8, 128>}, {transform_indices = @transform_2, window_bounds = array<i64: 8, 1>}, {transform_indices = @transform_3, window_bounds = array<i64: 1, 8, 128>}]} {
    %c0 = arith.constant 0 : index
    %c0_0 = arith.constant 0 : index
    %0 = vector.load %arg1[%c0, %c0_0] : memref<8x128xf32, #tpu.memory_space<vmem>>, vector<8x128xf32>
    %cst = arith.constant dense<0xFF800000> : vector<8xf32>
    %1 = vector.multi_reduction <maximumf>, %0, %cst [1] : vector<8x128xf32> to vector<8xf32>
    %2 = vector.shape_cast %1 : vector<8xf32> to vector<8x1xf32>
    %3 = vector.broadcast %2 : vector<8x1xf32> to vector<8x128xf32>
    %4 = arith.subf %0, %3 : vector<8x128xf32>
    %5 = math.exp %4 : vector<8x128xf32>
    %cst_1 = arith.constant dense<0.000000e+00> : vector<8xf32>
    %6 = vector.multi_reduction <add>, %5, %cst_1 [1] : vector<8x128xf32> to vector<8xf32>
    %7 = vector.shape_cast %6 : vector<8xf32> to vector<8x1xf32>
    %8 = math.log %7 : vector<8x1xf32>
    %9 = vector.broadcast %8 : vector<8x1xf32> to vector<8x128xf32>
    %10 = arith.subf %4, %9 : vector<8x128xf32>
    %c0_2 = arith.constant 0 : index
    %c0_3 = arith.constant 0 : index
    %11 = vector.load %arg2[%c0_2, %c0_3] : memref<8x128xf32, #tpu.memory_space<vmem>>, vector<8x128xf32>
    %cst_4 = arith.constant dense<0xFF800000> : vector<8xf32>
    %12 = vector.multi_reduction <maximumf>, %11, %cst_4 [1] : vector<8x128xf32> to vector<8xf32>
    %13 = vector.shape_cast %12 : vector<8xf32> to vector<8x1xf32>
    %14 = vector.broadcast %13 : vector<8x1xf32> to vector<8x128xf32>
    %15 = arith.subf %11, %14 : vector<8x128xf32>
    %16 = math.exp %15 : vector<8x128xf32>
    %cst_5 = arith.constant dense<0.000000e+00> : vector<8xf32>
    %17 = vector.multi_reduction <add>, %16, %cst_5 [1] : vector<8x128xf32> to vector<8xf32>
    %18 = vector.shape_cast %17 : vector<8xf32> to vector<8x1xf32>
    %19 = arith.subf %15, %10 : vector<8x128xf32>
    %20 = arith.mulf %16, %19 : vector<8x128xf32>
    %cst_6 = arith.constant dense<0.000000e+00> : vector<8xf32>
    %21 = vector.multi_reduction <add>, %20, %cst_6 [1] : vector<8x128xf32> to vector<8xf32>
    %22 = vector.shape_cast %21 : vector<8xf32> to vector<8x1xf32>
    %23 = tpu.reciprocal %18 : vector<8x1xf32> -> vector<8x1xf32>
    %24 = arith.mulf %22, %23 : vector<8x1xf32>
    %25 = math.log %18 : vector<8x1xf32>
    %26 = arith.subf %24, %25 : vector<8x1xf32>
    %c0_7 = arith.constant 0 : index
    %c0_8 = arith.constant 0 : index
    %27 = vector.load %arg3[%c0_7, %c0_8] : memref<8x1xi32, #tpu.memory_space<vmem>>, vector<8x1xi32>
    %28 = tpu.iota {dimensions = array<i32: 1>} : vector<8x128xi32>
    %29 = vector.broadcast %27 : vector<8x1xi32> to vector<8x128xi32>
    %30 = arith.cmpi eq, %28, %29 : vector<8x128xi32>
    %cst_9 = arith.constant 0.000000e+00 : f32
    %31 = vector.broadcast %cst_9 : f32 to vector<8x128xf32>
    %32 = arith.select %30, %4, %31 : vector<8x128xi1>, vector<8x128xf32>
    %cst_10 = arith.constant dense<0.000000e+00> : vector<8xf32>
    %33 = vector.multi_reduction <add>, %32, %cst_10 [1] : vector<8x128xf32> to vector<8xf32>
    %34 = vector.shape_cast %33 : vector<8xf32> to vector<8x1xf32>
    %35 = arith.subf %8, %34 : vector<8x1xf32>
    %c8_i32 = arith.constant 8 : i32
    %36 = arith.muli %arg0, %c8_i32 : i32
    %37 = tpu.iota {dimensions = array<i32: 0>} : vector<8x1xi32>
    %38 = vector.broadcast %36 : i32 to vector<8x1xi32>
    %39 = arith.addi %38, %37 : vector<8x1xi32>
    %c8_i32_11 = arith.constant 8 : i32
    %40 = vector.broadcast %c8_i32_11 : i32 to vector<8x1xi32>
    %41 = arith.cmpi slt, %39, %40 : vector<8x1xi32>
    %42 = arith.addf %26, %35 : vector<8x1xf32>
    %cst_12 = arith.constant 0.000000e+00 : f32
    %43 = vector.broadcast %cst_12 : f32 to vector<8x1xf32>
    %44 = arith.select %41, %42, %43 : vector<8x1xi1>, vector<8x1xf32>
    %45 = vector.shape_cast %44 : vector<8x1xf32> to vector<1x8x1xf32>
    %cst_13 = arith.constant dense<0.000000e+00> : vector<1xf32>
    %46 = vector.multi_reduction <add>, %45, %cst_13 [1, 2] : vector<1x8x1xf32> to vector<1xf32>
    %47 = vector.shape_cast %46 : vector<1xf32> to vector<1x1x1xf32>
    %48 = vector.extract %47[0, 0, 0] : f32 from vector<1x1x1xf32>
    %49 = tpu.iota {dimensions = array<i32: 1>} : vector<1x8x128xi32>
    %50 = tpu.iota {dimensions = array<i32: 2>} : vector<1x8x128xi32>
    %c0_i32 = arith.constant 0 : i32
    %51 = vector.broadcast %c0_i32 : i32 to vector<1x8x128xi32>
    %52 = arith.cmpi eq, %49, %51 : vector<1x8x128xi32>
    %c0_i32_14 = arith.constant 0 : i32
    %53 = vector.broadcast %c0_i32_14 : i32 to vector<1x8x128xi32>
    %54 = arith.cmpi eq, %50, %53 : vector<1x8x128xi32>
    %55 = arith.andi %52, %54 : vector<1x8x128xi1>
    %cst_15 = arith.constant 0.000000e+00 : f32
    %56 = vector.broadcast %48 : f32 to vector<1x8x128xf32>
    %57 = vector.broadcast %cst_15 : f32 to vector<1x8x128xf32>
    %58 = arith.select %55, %56, %57 : vector<1x8x128xi1>, vector<1x8x128xf32>
    %c0_16 = arith.constant 0 : index
    %c0_17 = arith.constant 0 : index
    %c0_18 = arith.constant 0 : index
    %59 = vector.load %arg4[%c0_16, %c0_17, %c0_18] : memref<1x8x128xf32, #tpu.memory_space<vmem>>, vector<1x8x128xf32>
    tpu.vector_store %arg4[%c0_16, %c0_17, %c0_18], %58 {strides = array<i32>} : memref<1x8x128xf32, #tpu.memory_space<vmem>>, vector<1x8x128xf32>,
    return
  }
  func.func @transform_0(%arg0: i32) -> (i32, i32) {
    %c0_i32 = arith.constant 0 : i32
    %c0_i32_0 = arith.constant 0 : i32
    return %arg0, %c0_i32 : i32, i32
  }
  func.func @transform_1(%arg0: i32) -> (i32, i32) {
    %c0_i32 = arith.constant 0 : i32
    %c0_i32_0 = arith.constant 0 : i32
    return %arg0, %c0_i32 : i32, i32
  }
  func.func @transform_2(%arg0: i32) -> (i32, i32) {
    %c0_i32 = arith.constant 0 : i32
    %c0_i32_0 = arith.constant 0 : i32
    return %arg0, %c0_i32 : i32, i32
  }
  func.func @transform_3(%arg0: i32) -> (i32, i32, i32) {
    %c0_i32 = arith.constant 0 : i32
    %c0_i32_0 = arith.constant 0 : i32
    %c0_i32_1 = arith.constant 0 : i32
    return %arg0, %c0_i32, %c0_i32_0 : i32, i32, i32
  }
}

</mosaic_0001>

<llo_original>
// kernel: tpu_custom_call.1
$region0: #{tpu_custom_call.1}
  #allocation0 [shape = 'u32[]', space=smem, size = 0x4, offset = 0x4, fixed_abs, tag = 'smem constant byte address 0x4 - core index']
  #allocation1 [shape = 'u32[144,128]{1,0:T(1,128)}', space=vmem, size = 0x12000, scoped, tag = 'internal scratch']
  %s0 = inlined_call_operand.vmem [shape: f32[8,128], index: 0, kind: input, shape index: {}]
  %s1 = inlined_call_operand.hbm [shape: f32[8,128], index: 1, kind: input, shape index: {}]
  %s2 = inlined_call_operand.vmem [shape: s32[8,1], index: 2, kind: input, shape index: {}]
  %s3 = inlined_call_operand.hbm [shape: f32[1,8,128], index: 3, kind: output, shape index: {}]
  %s4 = sld [smem:[#allocation0]]
  $region26: #{tpu_custom_call.1} parent=0
    _
  %s6 = ssub.s32 1, %s4
  %s7 = scalar_select 0, %s6, %s4
  $region1: #{tpu_custom_call.1} parent=0
    #allocation2 [shape = 'u8[4096]{0}', space=vmem, size = 0x1000, scoped, tag = 'input window, operand 1, single buffered']
    #allocation3 [shape = 's32[1]{0}', space=sflag, size = 0x4, scoped, tag = 'scoped memory for tpu_custom_call.1']
    #allocation4 [shape = 's32[1]{0}', space=sflag, size = 0x4, scoped, tag = 'scoped memory for tpu_custom_call.1']
    #allocation5 [shape = 'u8[4096]{0}', space=vmem, size = 0x1000, scoped, tag = 'output window, operand 0, single buffered']
    %8 = vsyncpa [#allocation3], 0
    %9 = vsyncpa [#allocation4], 0
    // Predicated region
    $region2: #{tpu_custom_call.1} parent=1 // pred_check
      _
    $region3: #{tpu_custom_call.1} parent=1 // pred_check_branch
      %11 = sbr.rel (0) target = $region5
    $region4: #{tpu_custom_call.1} parent=1 // pred_region
      _
    $region5: #{tpu_custom_call.1} parent=1 // pred_fallthru
      _
    // Predicated region
    $region6: #{tpu_custom_call.1} parent=1 // pred_check
      _
    $region7: #{tpu_custom_call.1} parent=1 // pred_check_branch
      %13 = sbr.rel (0) target = $region9
    $region8: #{tpu_custom_call.1} parent=1 // pred_region
      %s15 = ssub.s32 128, 128
      %16 = vsyncadd [#allocation3], %s15
      %s18 = sshll.u32 [#allocation2], 4
      %s19 = int_to_ptr.vmem [resolvable:$true] %s18
      %21 = dma.hbm_to_vmem [thread:$0]  %s1, 128, %s19, [#allocation3]
    $region9: #{tpu_custom_call.1} parent=1 // pred_fallthru
      _
    // Predicated region
    $region10: #{tpu_custom_call.1} parent=1 // pred_check
      _
    $region11: #{tpu_custom_call.1} parent=1 // pred_check_branch
      %23 = sbr.rel (0) target = $region13
    $region12: #{tpu_custom_call.1} parent=1 // pred_region
      _
    $region13: #{tpu_custom_call.1} parent=1 // pred_fallthru
      _
    // Predicated region
    $region14: #{tpu_custom_call.1} parent=1 // pred_check
      _
    $region15: #{tpu_custom_call.1} parent=1 // pred_check_branch
      %25 = sbr.rel (0) target = $region17
    $region16: #{tpu_custom_call.1} parent=1 // pred_region
      %26 = dma.done [#allocation3], 128
    $region17: #{tpu_custom_call.1} parent=1 // pred_fallthru
      _
    %v27 = vld [vmem:[%s0] sm:$0xff]
    %28 = vmax.xlane.f32.xlu0 %v27
    %v29 = vpop.xlane.xlu0 %28
    %v30 = vsub.f32 %v27, %v29
    %v31 = vmul.f32 %v30, 1.442695
    %v32 = vpow.pop %v31
    %33 = vadd.xlane.f32.xlu0 %v32
    %v34 = vpop.xlane.xlu0 %33
    %v35 = vlog2.pop %v34
    %v36 = vmul.f32 %v35, 0.6931472
    %v37 = vsub.f32 %v30, %v36
    %v38 = vld [vmem:[#allocation2] sm:$0xff]
    %39 = vmax.xlane.f32.xlu0 %v38
    %v40 = vpop.xlane.xlu0 %39
    %v41 = vsub.f32 %v38, %v40
    %v42 = vmul.f32 %v41, 1.442695
    %v43 = vpow.pop %v42
    %44 = vadd.xlane.f32.xlu0 %v43
    %v45 = vpop.xlane.xlu0 %44
    %v46 = vsub.f32 %v41, %v37
    %v47 = vmul.f32 %v43, %v46
    %48 = vadd.xlane.f32.xlu0 %v47
    %v49 = vpop.xlane.xlu0 %48
    %v50 = vrcp.pop %v45
    %v51 = vmul.f32 %v49, %v50
    %v52 = vlog2.pop %v45
    %v53 = vmul.f32 %v52, 0.6931472
    %v54 = vsub.f32 %v51, %v53
    %v55 = vld [vmem:[%s2] sm:$0xff]
    %v56 = vlaneseq
    %v57 = vand.u32 %v56, 127
    %58 = vset.pattern.permute.xlu0 0
    %59 = vperm.xlu0 %58, %v55
    %v60 = vpop.permute.xlu0 %59
    %vm61 = vcmp.eq.s32.totalorder %v57, %v60
    %v62 = vsel %vm61, %v30, 0.0
    %63 = vadd.xlane.f32.xlu0 %v62
    %v64 = vpop.xlane.xlu0 %63
    %v65 = vsub.f32 %v36, %v64
    %s66 = smul.u32 0, 8
    %v67 = vlaneseq
    %v68 = vshrl.u32 %v67, 7
    %v69 = vstv %s66
    %v70 = vadd.s32 %v69, %v68
    %vm71 = vcmp.lt.s32.totalorder %v70, 8
    %v72 = vadd.f32 %v54, %v65
    %v73 = vsel %vm71, %v72, 0.0
    %vm74 = vcmask 7168
    %v75 = vsel %vm74, %v73, 0.0
    %76 = vadd.xlane.f32.xlu0 %v75
    %v77 = vpop.xlane.xlu0 %76
    %v78 = vrot.slane %v77, 4
    %v79 = vadd.f32 %v77, %v78
    %v80 = vrot.slane %v79, 2
    %v81 = vadd.f32 %v79, %v80
    %v82 = vrot.slane %v81, 1
    %v83 = vadd.f32 %v81, %v82
    %s84 = vtos %v83
    %vm85 = vcmp.eq.s32.totalorder %v68, 0
    %vm86 = vcmp.eq.s32.totalorder %v57, 0
    %vm87 = vmand %vm85, %vm86
    %v88 = vstv %s84
    %v89 = vsel %vm87, %v88, 0.0
    %90 = vst [vmem:[#allocation5] sm:$0xff] %v89
    // Predicated region
    $region18: #{tpu_custom_call.1} parent=1 // pred_check
      _
    $region19: #{tpu_custom_call.1} parent=1 // pred_check_branch
      %92 = sbr.rel (0) target = $region21
    $region20: #{tpu_custom_call.1} parent=1 // pred_region
      %s94 = ssub.s32 128, 128
      %95 = vsyncadd [#allocation4], %s94
      %s97 = sshll.u32 [#allocation5], 4
      %s98 = int_to_ptr.vmem [resolvable:$true] %s97
      %100 = dma.vmem_to_hbm [thread:$0]  %s98, 128, %s3, [#allocation4]
    $region21: #{tpu_custom_call.1} parent=1 // pred_fallthru
      _
    // Predicated region
    $region22: #{tpu_custom_call.1} parent=1 // pred_check
      _
    $region23: #{tpu_custom_call.1} parent=1 // pred_check_branch
      %102 = sbr.rel (0) target = $region25
    $region24: #{tpu_custom_call.1} parent=1 // pred_region
      %103 = dma.done [#allocation4], 128
    $region25: #{tpu_custom_call.1} parent=1 // pred_fallthru
      _
    %104 = vsyncpa [#allocation3], 1
    %105 = vsyncpa [#allocation4], 1

</llo_original>
